<compile_context>
chip_gen: v6e
topology: v6e:2x2x1
jax: 0.10.0
libtpu: 0.0.40
codegen_flags: <defaults>
</compile_context>

<pallas_src>
import functools

import jax
import jax.numpy as jnp
from jax.experimental import pallas as pl
from jax.experimental.pallas import tpu as pltpu


def mha_kernel(x_ref, wqkv_ref, bqkv_ref, wo_ref, bo_ref, o_ref,
               *, head_dim, heads_per_group, n_patches, b_tile):
    """One grid step == (one batch tile, one head group).

    x_ref    : (BT*N, E)      bf16  (same block for every group)
    wqkv_ref : (E, hg*3*hd)   bf16  per-group fused [Q|K|V]-per-head weights
                                    (1/sqrt(hd) folded into the Q columns)
    bqkv_ref : (1, hg*3*hd)   f32   per-group fused bias (Q part pre-scaled)
    wo_ref   : (hg*hd, E)     bf16  per-group rows of fc_out weight
    bo_ref   : (1, E)         f32   fc_out bias (added once, at group 0)
    o_ref    : (BT*N, E)      f32   output block; resident across the group
                                    axis, so it doubles as the accumulator
    """
    g = pl.program_id(1)
    hd = head_dim
    hg = heads_per_group
    N = n_patches
    BT = b_tile

    # Fused per-group Q|K|V projection: one MXU pass, contraction dim = E,
    # output lane width = 3*hg*hd.  x is already bf16 (cast once in wrapper).
    qkv = jnp.dot(x_ref[...], wqkv_ref[...],
                  preferred_element_type=jnp.float32) + bqkv_ref[...]   # (BT*N, hg*3*hd) f32

    contrib = None
    for hh in range(hg):                       # static unroll over heads in the group
        base = hh * 3 * hd
        q = qkv[:, base:base + hd].astype(jnp.bfloat16).reshape(BT, N, hd)
        k = qkv[:, base + hd:base + 2 * hd].astype(jnp.bfloat16).reshape(BT, N, hd)
        v = qkv[:, base + 2 * hd:base + 3 * hd].astype(jnp.bfloat16).reshape(BT, N, hd)

        # Scores: contract the last dims directly (no explicit transpose of K).
        s = jnp.einsum("bqd,bkd->bqk", q, k,
                       preferred_element_type=jnp.float32)              # (BT, N, N) f32

        # Numerically-stable softmax kept UN-normalised; normalisation is
        # applied to o_h after the PV matmul (BT*N*hd multiplies instead of
        # BT*N*N), with an exact reciprocal (cost is now negligible).
        m = jnp.max(s, axis=-1, keepdims=True)
        p = jnp.exp(s - m)
        denom = jnp.sum(p, axis=-1, keepdims=True)

        o_h = jnp.einsum("bqk,bkd->bqd", p.astype(jnp.bfloat16), v,
                         preferred_element_type=jnp.float32)            # (BT, N, hd) f32
        o_h = o_h * pl.reciprocal(denom)

        # This head's contribution to fc_out; summing per-head contributions
        # is identical to concat(heads) @ Wo (no concatenate needed).
        c = jnp.dot(o_h.reshape(BT * N, hd).astype(jnp.bfloat16),
                    wo_ref[hh * hd:(hh + 1) * hd, :],
                    preferred_element_type=jnp.float32)                 # (BT*N, E) f32
        contrib = c if contrib is None else contrib + c

    @pl.when(g == 0)
    def _():
        o_ref[...] = jnp.broadcast_to(bo_ref[...], o_ref.shape)

    o_ref[...] += contrib


def _pick_head_group(num_heads, head_dim):
    """Largest divisor of num_heads whose per-group Q slab is <= 256 lanes."""
    hg = 1
    for cand in range(1, num_heads + 1):
        if num_heads % cand == 0 and cand * head_dim <= 256:
            hg = cand
    return hg


def _vmem_capacity_bytes():
    try:
        info = pltpu.get_tpu_info()
        cap = getattr(info, "vmem_capacity_bytes", None)
        if cap:
            return int(cap)
    except Exception:
        pass
    return 64 * 1024 * 1024      # conservative (v7x-sized) fallback


def _estimate_vmem_bytes(b_tile, N, E, hd, hg):
    rows = b_tile * N
    ghd = hg * hd
    x_blk = 2 * rows * E * 2                                   # bf16 in, double-buffered
    o_blk = 2 * rows * E * 4                                   # f32 out, double-buffered
    w_blk = 2 * (E * 3 * ghd * 2 + ghd * E * 2 + 3 * ghd * 4 + E * 4)
    per_head = b_tile * N * N * (4 + 2) + b_tile * N * hd * 4  # s(f32)+p(bf16)+o_h(f32)
    inter = rows * 3 * ghd * 4 + rows * E * 4 + 2 * per_head   # qkv + contrib + slack
    return x_blk + o_blk + w_blk + inter


def _pick_b_tile(B, N, E, hd, hg, budget):
    def legal(t):
        return t == B or (t * N) % 8 == 0
    divisors = [t for t in range(1, B + 1) if B % t == 0 and legal(t)]
    fitting = [t for t in divisors if _estimate_vmem_bytes(t, N, E, hd, hg) <= budget]
    if not fitting:
        return min(divisors)                      # best effort: smallest legal tile
    multi = [t for t in fitting if B // t >= 2]   # >=2 batch tiles -> both v7x cores busy
    return max(multi) if multi else max(fitting)


def _pack_params(params, num_heads, hg):
    """Repack Linear params into per-group, MXU-friendly tensors."""
    E = params["wq"].shape[0]
    hd = E // num_heads
    G = num_heads // hg
    scale = 1.0 / (hd ** 0.5)

    wq = params["wq"].reshape(E, num_heads, hd) * scale   # fold 1/sqrt(hd) into Q
    wk = params["wk"].reshape(E, num_heads, hd)
    wv = params["wv"].reshape(E, num_heads, hd)
    w_stack = jnp.stack([wq, wk, wv], axis=2)             # (E, H, 3, hd)
    wqkv_g = (w_stack.reshape(E, G, hg * 3 * hd)
              .transpose(1, 0, 2).astype(jnp.bfloat16))   # (G, E, hg*3*hd)

    bq = params["bq"].reshape(num_heads, hd) * scale
    bk = params["bk"].reshape(num_heads, hd)
    bv = params["bv"].reshape(num_heads, hd)
    b_stack = jnp.stack([bq, bk, bv], axis=1)             # (H, 3, hd)
    bqkv_g = b_stack.reshape(G, 1, hg * 3 * hd).astype(jnp.float32)

    wo_g = params["wo"].reshape(G, hg * hd, E).astype(jnp.bfloat16)   # (G, hg*hd, E)
    bo = params["bo"].astype(jnp.float32)                              # (1, E)
    return wqkv_g, bqkv_g, wo_g, bo


def multi_head_attention(x, params, *, num_heads, b_tile=None, head_group=None):
    """x: (B, N, E) float32.  params: dict of (E,E) weights (in,out) and (1,E) biases."""
    B, N, E = x.shape
    assert E % num_heads == 0, "emb_dim must be divisible by num_heads"
    hd = E // num_heads

    hg = head_group if head_group is not None else _pick_head_group(num_heads, hd)
    assert num_heads % hg == 0
    G = num_heads // hg

    vmem_cap = _vmem_capacity_bytes()
    if b_tile is None:
        b_tile = _pick_b_tile(B, N, E, hd, hg, budget=int(vmem_cap * 0.70))
    assert B % b_tile == 0, "b_tile must divide the batch size"
    if b_tile < B:
        assert (b_tile * N) % 8 == 0, "partial batch tiles need 8-row alignment"

    wqkv_g, bqkv_g, wo_g, bo = _pack_params(params, num_heads, hg)

    x2 = x.reshape(B * N, E).astype(jnp.bfloat16)   # cast ONCE here, not per group
    rows = b_tile * N
    ghd3 = 3 * hg * hd

    kernel = functools.partial(mha_kernel, head_dim=hd, heads_per_group=hg,
                               n_patches=N, b_tile=b_tile)

    out2 = pl.pallas_call(
        kernel,
        out_shape=jax.ShapeDtypeStruct((B * N, E), jnp.float32),
        grid_spec=pltpu.PrefetchScalarGridSpec(
            num_scalar_prefetch=0,
            grid=(B // b_tile, G),
            in_specs=[
                pl.BlockSpec((rows, E), lambda b, g: (b, 0)),            # x rows (reused over g)
                pl.BlockSpec((None, E, ghd3), lambda b, g: (g, 0, 0)),   # fused per-group QKV weight
                pl.BlockSpec((None, 1, ghd3), lambda b, g: (g, 0, 0)),   # fused per-group QKV bias
                pl.BlockSpec((None, hg * hd, E), lambda b, g: (g, 0, 0)),  # per-group fc_out rows
                pl.BlockSpec((1, E), lambda b, g: (0, 0)),               # fc_out bias
            ],
            out_specs=pl.BlockSpec((rows, E), lambda b, g: (b, 0)),
        ),
        compiler_params=pltpu.CompilerParams(
            dimension_semantics=("parallel", "arbitrary"),
            vmem_limit_bytes=int(vmem_cap * 0.85)),
    )(x2, wqkv_g, bqkv_g, wo_g, bo)

    return out2.reshape(B, N, E).astype(x.dtype)


def _init_linear(key, in_f, out_f):
    """Deterministic init mimicking torch.nn.Linear (uniform +-1/sqrt(in_f)).
    Returns weight already transposed to (in_f, out_f) and bias as (1, out_f)."""
    kw, kb = jax.random.split(key)
    bound = 1.0 / (in_f ** 0.5)
    w = jax.random.uniform(kw, (out_f, in_f), jnp.float32, -bound, bound)
    b = jax.random.uniform(kb, (out_f,), jnp.float32, -bound, bound)
    return w.T, b.reshape(1, out_f)


def _reference(x, params, num_heads):
    """Pure-JAX (f32) reference mirroring the PyTorch forward exactly."""
    B, N, E = x.shape
    hd = E // num_heads
    q = (x @ params["wq"] + params["bq"]).reshape(B, N, num_heads, hd)
    k = (x @ params["wk"] + params["bk"]).reshape(B, N, num_heads, hd)
    v = (x @ params["wv"] + params["bv"]).reshape(B, N, num_heads, hd)
    qk = jnp.einsum("bqhd,bkhd->bhqk", q, k) / (hd ** 0.5)
    attn = jax.nn.softmax(qk, axis=-1)
    out = jnp.einsum("bhqk,bkhd->bqhd", attn, v).reshape(B, N, E)
    return out @ params["wo"] + params["bo"]


if __name__ == "__main__":
    EMB_DIM = 32
    NUM_HEADS = 4
    BATCH = 2
    N_PATCHES = 8

    root = jax.random.PRNGKey(0)
    kx, kq, kk, kv, ko = jax.random.split(root, 5)

    x = jax.random.normal(kx, (BATCH, N_PATCHES, EMB_DIM), jnp.float32)

    wq, bq = _init_linear(kq, EMB_DIM, EMB_DIM)
    wk, bk = _init_linear(kk, EMB_DIM, EMB_DIM)
    wv, bv = _init_linear(kv, EMB_DIM, EMB_DIM)
    wo, bo = _init_linear(ko, EMB_DIM, EMB_DIM)
    params = dict(wq=wq, bq=bq, wk=wk, bk=bk, wv=wv, bv=bv, wo=wo, bo=bo)

    out = multi_head_attention(x, params, num_heads=NUM_HEADS)
    out = jax.block_until_ready(out)

    ref = _reference(x, params, NUM_HEADS)
    assert out.shape == (BATCH, N_PATCHES, EMB_DIM)
    # Tolerance reflects bf16 MXU operands (f32 accumulation / f32 softmax);
    # structural bugs would produce errors on the order of the output scale.
    assert jnp.allclose(out, ref, atol=4e-2, rtol=4e-2), "mismatch vs reference"

    print("KERNEL_OK")
</pallas_src>

<mosaic_0001>
module attributes {stable_mosaic.version = 11 : i64} {
  func.func @mha_kernel(%arg0: i32, %arg1: i32, %arg2: memref<8x32xbf16, #tpu.memory_space<vmem>>, %arg3: memref<1x32x96xbf16, #tpu.memory_space<vmem>>, %arg4: memref<1x1x96xf32, #tpu.memory_space<vmem>>, %arg5: memref<1x32x32xbf16, #tpu.memory_space<vmem>>, %arg6: memref<1x32xf32, #tpu.memory_space<vmem>>, %arg7: memref<8x32xf32, #tpu.memory_space<vmem>>) attributes {dimension_semantics = [#tpu.dimension_semantics<parallel>, #tpu.dimension_semantics<arbitrary>], iteration_bounds = array<i64: 2, 1>, scalar_prefetch = 0 : i64, scratch_operands = 0 : i64, tpu.core_type = #tpu.core_type<tc>, window_params = [{transform_indices = @transform_0, window_bounds = array<i64: 8, 32>}, {transform_indices = @transform_1, window_bounds = array<i64: 1, 32, 96>}, {transform_indices = @transform_2, window_bounds = array<i64: 1, 1, 96>}, {transform_indices = @transform_3, window_bounds = array<i64: 1, 32, 32>}, {pipeline_mode = #tpu.pipeline_mode<synchronous>, transform_indices = @transform_4, window_bounds = array<i64: 1, 32>}, {transform_indices = @transform_5, window_bounds = array<i64: 8, 32>}]} {
    %c0 = arith.constant 0 : index
    %c0_0 = arith.constant 0 : index
    %0 = vector.load %arg2[%c0, %c0_0] : memref<8x32xbf16, #tpu.memory_space<vmem>>, vector<8x32xbf16>
    %c0_1 = arith.constant 0 : index
    %c0_2 = arith.constant 0 : index
    %c0_3 = arith.constant 0 : index
    %1 = vector.load %arg3[%c0_1, %c0_2, %c0_3] : memref<1x32x96xbf16, #tpu.memory_space<vmem>>, vector<1x32x96xbf16>
    %2 = vector.shape_cast %1 : vector<1x32x96xbf16> to vector<32x96xbf16>
    %cst = arith.constant dense<0.000000e+00> : vector<8x96xf32>
    %3 = tpu.matmul %0, %2, %cst {dimension_numbers = #tpu.dot_dimension_numbers<[1], [0], [0], [1], [0, 0, 1, 1], [], []>} : vector<8x32xbf16>, vector<32x96xbf16>, vector<8x96xf32> -> vector<8x96xf32>
    %c0_4 = arith.constant 0 : index
    %c0_5 = arith.constant 0 : index
    %c0_6 = arith.constant 0 : index
    %4 = vector.load %arg4[%c0_4, %c0_5, %c0_6] : memref<1x1x96xf32, #tpu.memory_space<vmem>>, vector<1x1x96xf32>
    %5 = vector.shape_cast %4 : vector<1x1x96xf32> to vector<1x96xf32>
    %6 = vector.broadcast %5 : vector<1x96xf32> to vector<8x96xf32>
    %7 = arith.addf %3, %6 : vector<8x96xf32>
    %8 = vector.extract_strided_slice %7 {offsets = [0, 0], sizes = [8, 8], strides = [1, 1]} : vector<8x96xf32> to vector<8x8xf32>
    %9 = arith.truncf %8 : vector<8x8xf32> to vector<8x8xbf16>
    %10 = vector.shape_cast %9 : vector<8x8xbf16> to vector<1x8x8xbf16>
    %11 = vector.extract_strided_slice %7 {offsets = [0, 8], sizes = [8, 8], strides = [1, 1]} : vector<8x96xf32> to vector<8x8xf32>
    %12 = arith.truncf %11 : vector<8x8xf32> to vector<8x8xbf16>
    %13 = vector.shape_cast %12 : vector<8x8xbf16> to vector<1x8x8xbf16>
    %14 = vector.extract_strided_slice %7 {offsets = [0, 16], sizes = [8, 8], strides = [1, 1]} : vector<8x96xf32> to vector<8x8xf32>
    %15 = arith.truncf %14 : vector<8x8xf32> to vector<8x8xbf16>
    %16 = vector.shape_cast %15 : vector<8x8xbf16> to vector<1x8x8xbf16>
    "tpu.trace_start"() <{level = 10 : i32, message = "bqd,bkd->bqk"}> : () -> ()
    %cst_7 = arith.constant dense<0.000000e+00> : vector<1x8x8xf32>
    %17 = tpu.matmul %10, %13, %cst_7 {dimension_numbers = #tpu.dot_dimension_numbers<[2], [2], [1], [1], [0, 0, 0, 1, 1, 1], [0], [0]>} : vector<1x8x8xbf16>, vector<1x8x8xbf16>, vector<1x8x8xf32> -> vector<1x8x8xf32>
    "tpu.trace_stop"() : () -> ()
    %cst_8 = arith.constant dense<0xFF800000> : vector<1x8xf32>
    %18 = vector.multi_reduction <maximumf>, %17, %cst_8 [2] : vector<1x8x8xf32> to vector<1x8xf32>
    %19 = vector.shape_cast %18 : vector<1x8xf32> to vector<1x8x1xf32>
    %20 = vector.broadcast %19 : vector<1x8x1xf32> to vector<1x8x8xf32>
    %21 = arith.subf %17, %20 : vector<1x8x8xf32>
    %22 = math.exp %21 : vector<1x8x8xf32>
    %cst_9 = arith.constant dense<0.000000e+00> : vector<1x8xf32>
    %23 = vector.multi_reduction <add>, %22, %cst_9 [2] : vector<1x8x8xf32> to vector<1x8xf32>
    %24 = vector.shape_cast %23 : vector<1x8xf32> to vector<1x8x1xf32>
    %25 = arith.truncf %22 : vector<1x8x8xf32> to vector<1x8x8xbf16>
    "tpu.trace_start"() <{level = 10 : i32, message = "bqk,bkd->bqd"}> : () -> ()
    %cst_10 = arith.constant dense<0.000000e+00> : vector<1x8x8xf32>
    %26 = tpu.matmul %25, %16, %cst_10 {dimension_numbers = #tpu.dot_dimension_numbers<[2], [1], [1], [2], [0, 0, 0, 1, 1, 2], [0], [0]>} : vector<1x8x8xbf16>, vector<1x8x8xbf16>, vector<1x8x8xf32> -> vector<1x8x8xf32>
    "tpu.trace_stop"() : () -> ()
    %27 = tpu.reciprocal %24 : vector<1x8x1xf32> -> vector<1x8x1xf32>
    %28 = vector.broadcast %27 : vector<1x8x1xf32> to vector<1x8x8xf32>
    %29 = arith.mulf %26, %28 : vector<1x8x8xf32>
    %30 = vector.shape_cast %29 : vector<1x8x8xf32> to vector<8x8xf32>
    %31 = arith.truncf %30 : vector<8x8xf32> to vector<8x8xbf16>
    %c0_11 = arith.constant 0 : index
    %c0_12 = arith.constant 0 : index
    %c0_13 = arith.constant 0 : index
    %32 = vector.load %arg5[%c0_11, %c0_12, %c0_13] : memref<1x32x32xbf16, #tpu.memory_space<vmem>>, vector<1x8x32xbf16>
    %33 = vector.shape_cast %32 : vector<1x8x32xbf16> to vector<8x32xbf16>
    %cst_14 = arith.constant dense<0.000000e+00> : vector<8x32xf32>
    %34 = tpu.matmul %31, %33, %cst_14 {dimension_numbers = #tpu.dot_dimension_numbers<[1], [0], [0], [1], [0, 0, 1, 1], [], []>} : vector<8x8xbf16>, vector<8x32xbf16>, vector<8x32xf32> -> vector<8x32xf32>
    %35 = vector.extract_strided_slice %7 {offsets = [0, 24], sizes = [8, 8], strides = [1, 1]} : vector<8x96xf32> to vector<8x8xf32>
    %36 = arith.truncf %35 : vector<8x8xf32> to vector<8x8xbf16>
    %37 = vector.shape_cast %36 : vector<8x8xbf16> to vector<1x8x8xbf16>
    %38 = vector.extract_strided_slice %7 {offsets = [0, 32], sizes = [8, 8], strides = [1, 1]} : vector<8x96xf32> to vector<8x8xf32>
    %39 = arith.truncf %38 : vector<8x8xf32> to vector<8x8xbf16>
    %40 = vector.shape_cast %39 : vector<8x8xbf16> to vector<1x8x8xbf16>
    %41 = vector.extract_strided_slice %7 {offsets = [0, 40], sizes = [8, 8], strides = [1, 1]} : vector<8x96xf32> to vector<8x8xf32>
    %42 = arith.truncf %41 : vector<8x8xf32> to vector<8x8xbf16>
    %43 = vector.shape_cast %42 : vector<8x8xbf16> to vector<1x8x8xbf16>
    "tpu.trace_start"() <{level = 10 : i32, message = "bqd,bkd->bqk"}> : () -> ()
    %cst_15 = arith.constant dense<0.000000e+00> : vector<1x8x8xf32>
    %44 = tpu.matmul %37, %40, %cst_15 {dimension_numbers = #tpu.dot_dimension_numbers<[2], [2], [1], [1], [0, 0, 0, 1, 1, 1], [0], [0]>} : vector<1x8x8xbf16>, vector<1x8x8xbf16>, vector<1x8x8xf32> -> vector<1x8x8xf32>
    "tpu.trace_stop"() : () -> ()
    %cst_16 = arith.constant dense<0xFF800000> : vector<1x8xf32>
    %45 = vector.multi_reduction <maximumf>, %44, %cst_16 [2] : vector<1x8x8xf32> to vector<1x8xf32>
    %46 = vector.shape_cast %45 : vector<1x8xf32> to vector<1x8x1xf32>
    %47 = vector.broadcast %46 : vector<1x8x1xf32> to vector<1x8x8xf32>
    %48 = arith.subf %44, %47 : vector<1x8x8xf32>
    %49 = math.exp %48 : vector<1x8x8xf32>
    %cst_17 = arith.constant dense<0.000000e+00> : vector<1x8xf32>
    %50 = vector.multi_reduction <add>, %49, %cst_17 [2] : vector<1x8x8xf32> to vector<1x8xf32>
    %51 = vector.shape_cast %50 : vector<1x8xf32> to vector<1x8x1xf32>
    %52 = arith.truncf %49 : vector<1x8x8xf32> to vector<1x8x8xbf16>
    "tpu.trace_start"() <{level = 10 : i32, message = "bqk,bkd->bqd"}> : () -> ()
    %cst_18 = arith.constant dense<0.000000e+00> : vector<1x8x8xf32>
    %53 = tpu.matmul %52, %43, %cst_18 {dimension_numbers = #tpu.dot_dimension_numbers<[2], [1], [1], [2], [0, 0, 0, 1, 1, 2], [0], [0]>} : vector<1x8x8xbf16>, vector<1x8x8xbf16>, vector<1x8x8xf32> -> vector<1x8x8xf32>
    "tpu.trace_stop"() : () -> ()
    %54 = tpu.reciprocal %51 : vector<1x8x1xf32> -> vector<1x8x1xf32>
    %55 = vector.broadcast %54 : vector<1x8x1xf32> to vector<1x8x8xf32>
    %56 = arith.mulf %53, %55 : vector<1x8x8xf32>
    %57 = vector.shape_cast %56 : vector<1x8x8xf32> to vector<8x8xf32>
    %58 = arith.truncf %57 : vector<8x8xf32> to vector<8x8xbf16>
    %c0_19 = arith.constant 0 : index
    %c8 = arith.constant 8 : index
    %c0_20 = arith.constant 0 : index
    %59 = vector.load %arg5[%c0_19, %c8, %c0_20] : memref<1x32x32xbf16, #tpu.memory_space<vmem>>, vector<1x8x32xbf16>
    %60 = vector.shape_cast %59 : vector<1x8x32xbf16> to vector<8x32xbf16>
    %cst_21 = arith.constant dense<0.000000e+00> : vector<8x32xf32>
    %61 = tpu.matmul %58, %60, %cst_21 {dimension_numbers = #tpu.dot_dimension_numbers<[1], [0], [0], [1], [0, 0, 1, 1], [], []>} : vector<8x8xbf16>, vector<8x32xbf16>, vector<8x32xf32> -> vector<8x32xf32>
    %62 = arith.addf %34, %61 : vector<8x32xf32>
    %63 = vector.extract_strided_slice %7 {offsets = [0, 48], sizes = [8, 8], strides = [1, 1]} : vector<8x96xf32> to vector<8x8xf32>
    %64 = arith.truncf %63 : vector<8x8xf32> to vector<8x8xbf16>
    %65 = vector.shape_cast %64 : vector<8x8xbf16> to vector<1x8x8xbf16>
    %66 = vector.extract_strided_slice %7 {offsets = [0, 56], sizes = [8, 8], strides = [1, 1]} : vector<8x96xf32> to vector<8x8xf32>
    %67 = arith.truncf %66 : vector<8x8xf32> to vector<8x8xbf16>
    %68 = vector.shape_cast %67 : vector<8x8xbf16> to vector<1x8x8xbf16>
    %69 = vector.extract_strided_slice %7 {offsets = [0, 64], sizes = [8, 8], strides = [1, 1]} : vector<8x96xf32> to vector<8x8xf32>
    %70 = arith.truncf %69 : vector<8x8xf32> to vector<8x8xbf16>
    %71 = vector.shape_cast %70 : vector<8x8xbf16> to vector<1x8x8xbf16>
    "tpu.trace_start"() <{level = 10 : i32, message = "bqd,bkd->bqk"}> : () -> ()
    %cst_22 = arith.constant dense<0.000000e+00> : vector<1x8x8xf32>
    %72 = tpu.matmul %65, %68, %cst_22 {dimension_numbers = #tpu.dot_dimension_numbers<[2], [2], [1], [1], [0, 0, 0, 1, 1, 1], [0], [0]>} : vector<1x8x8xbf16>, vector<1x8x8xbf16>, vector<1x8x8xf32> -> vector<1x8x8xf32>
    "tpu.trace_stop"() : () -> ()
    %cst_23 = arith.constant dense<0xFF800000> : vector<1x8xf32>
    %73 = vector.multi_reduction <maximumf>, %72, %cst_23 [2] : vector<1x8x8xf32> to vector<1x8xf32>
    %74 = vector.shape_cast %73 : vector<1x8xf32> to vector<1x8x1xf32>
    %75 = vector.broadcast %74 : vector<1x8x1xf32> to vector<1x8x8xf32>
    %76 = arith.subf %72, %75 : vector<1x8x8xf32>
    %77 = math.exp %76 : vector<1x8x8xf32>
    %cst_24 = arith.constant dense<0.000000e+00> : vector<1x8xf32>
    %78 = vector.multi_reduction <add>, %77, %cst_24 [2] : vector<1x8x8xf32> to vector<1x8xf32>
    %79 = vector.shape_cast %78 : vector<1x8xf32> to vector<1x8x1xf32>
    %80 = arith.truncf %77 : vector<1x8x8xf32> to vector<1x8x8xbf16>
    "tpu.trace_start"() <{level = 10 : i32, message = "bqk,bkd->bqd"}> : () -> ()
    %cst_25 = arith.constant dense<0.000000e+00> : vector<1x8x8xf32>
    %81 = tpu.matmul %80, %71, %cst_25 {dimension_numbers = #tpu.dot_dimension_numbers<[2], [1], [1], [2], [0, 0, 0, 1, 1, 2], [0], [0]>} : vector<1x8x8xbf16>, vector<1x8x8xbf16>, vector<1x8x8xf32> -> vector<1x8x8xf32>
    "tpu.trace_stop"() : () -> ()
    %82 = tpu.reciprocal %79 : vector<1x8x1xf32> -> vector<1x8x1xf32>
    %83 = vector.broadcast %82 : vector<1x8x1xf32> to vector<1x8x8xf32>
    %84 = arith.mulf %81, %83 : vector<1x8x8xf32>
    %85 = vector.shape_cast %84 : vector<1x8x8xf32> to vector<8x8xf32>
    %86 = arith.truncf %85 : vector<8x8xf32> to vector<8x8xbf16>
    %c0_26 = arith.constant 0 : index
    %c16 = arith.constant 16 : index
    %c0_27 = arith.constant 0 : index
    %87 = vector.load %arg5[%c0_26, %c16, %c0_27] : memref<1x32x32xbf16, #tpu.memory_space<vmem>>, vector<1x8x32xbf16>
    %88 = vector.shape_cast %87 : vector<1x8x32xbf16> to vector<8x32xbf16>
    %cst_28 = arith.constant dense<0.000000e+00> : vector<8x32xf32>
    %89 = tpu.matmul %86, %88, %cst_28 {dimension_numbers = #tpu.dot_dimension_numbers<[1], [0], [0], [1], [0, 0, 1, 1], [], []>} : vector<8x8xbf16>, vector<8x32xbf16>, vector<8x32xf32> -> vector<8x32xf32>
    %90 = arith.addf %62, %89 : vector<8x32xf32>
    %91 = vector.extract_strided_slice %7 {offsets = [0, 72], sizes = [8, 8], strides = [1, 1]} : vector<8x96xf32> to vector<8x8xf32>
    %92 = arith.truncf %91 : vector<8x8xf32> to vector<8x8xbf16>
    %93 = vector.shape_cast %92 : vector<8x8xbf16> to vector<1x8x8xbf16>
    %94 = vector.extract_strided_slice %7 {offsets = [0, 80], sizes = [8, 8], strides = [1, 1]} : vector<8x96xf32> to vector<8x8xf32>
    %95 = arith.truncf %94 : vector<8x8xf32> to vector<8x8xbf16>
    %96 = vector.shape_cast %95 : vector<8x8xbf16> to vector<1x8x8xbf16>
    %97 = vector.extract_strided_slice %7 {offsets = [0, 88], sizes = [8, 8], strides = [1, 1]} : vector<8x96xf32> to vector<8x8xf32>
    %98 = arith.truncf %97 : vector<8x8xf32> to vector<8x8xbf16>
    %99 = vector.shape_cast %98 : vector<8x8xbf16> to vector<1x8x8xbf16>
    "tpu.trace_start"() <{level = 10 : i32, message = "bqd,bkd->bqk"}> : () -> ()
    %cst_29 = arith.constant dense<0.000000e+00> : vector<1x8x8xf32>
    %100 = tpu.matmul %93, %96, %cst_29 {dimension_numbers = #tpu.dot_dimension_numbers<[2], [2], [1], [1], [0, 0, 0, 1, 1, 1], [0], [0]>} : vector<1x8x8xbf16>, vector<1x8x8xbf16>, vector<1x8x8xf32> -> vector<1x8x8xf32>
    "tpu.trace_stop"() : () -> ()
    %cst_30 = arith.constant dense<0xFF800000> : vector<1x8xf32>
    %101 = vector.multi_reduction <maximumf>, %100, %cst_30 [2] : vector<1x8x8xf32> to vector<1x8xf32>
    %102 = vector.shape_cast %101 : vector<1x8xf32> to vector<1x8x1xf32>
    %103 = vector.broadcast %102 : vector<1x8x1xf32> to vector<1x8x8xf32>
    %104 = arith.subf %100, %103 : vector<1x8x8xf32>
    %105 = math.exp %104 : vector<1x8x8xf32>
    %cst_31 = arith.constant dense<0.000000e+00> : vector<1x8xf32>
    %106 = vector.multi_reduction <add>, %105, %cst_31 [2] : vector<1x8x8xf32> to vector<1x8xf32>
    %107 = vector.shape_cast %106 : vector<1x8xf32> to vector<1x8x1xf32>
    %108 = arith.truncf %105 : vector<1x8x8xf32> to vector<1x8x8xbf16>
    "tpu.trace_start"() <{level = 10 : i32, message = "bqk,bkd->bqd"}> : () -> ()
    %cst_32 = arith.constant dense<0.000000e+00> : vector<1x8x8xf32>
    %109 = tpu.matmul %108, %99, %cst_32 {dimension_numbers = #tpu.dot_dimension_numbers<[2], [1], [1], [2], [0, 0, 0, 1, 1, 2], [0], [0]>} : vector<1x8x8xbf16>, vector<1x8x8xbf16>, vector<1x8x8xf32> -> vector<1x8x8xf32>
    "tpu.trace_stop"() : () -> ()
    %110 = tpu.reciprocal %107 : vector<1x8x1xf32> -> vector<1x8x1xf32>
    %111 = vector.broadcast %110 : vector<1x8x1xf32> to vector<1x8x8xf32>
    %112 = arith.mulf %109, %111 : vector<1x8x8xf32>
    %113 = vector.shape_cast %112 : vector<1x8x8xf32> to vector<8x8xf32>
    %114 = arith.truncf %113 : vector<8x8xf32> to vector<8x8xbf16>
    %c0_33 = arith.constant 0 : index
    %c24 = arith.constant 24 : index
    %c0_34 = arith.constant 0 : index
    %115 = vector.load %arg5[%c0_33, %c24, %c0_34] : memref<1x32x32xbf16, #tpu.memory_space<vmem>>, vector<1x8x32xbf16>
    %116 = vector.shape_cast %115 : vector<1x8x32xbf16> to vector<8x32xbf16>
    %cst_35 = arith.constant dense<0.000000e+00> : vector<8x32xf32>
    %117 = tpu.matmul %114, %116, %cst_35 {dimension_numbers = #tpu.dot_dimension_numbers<[1], [0], [0], [1], [0, 0, 1, 1], [], []>} : vector<8x8xbf16>, vector<8x32xbf16>, vector<8x32xf32> -> vector<8x32xf32>
    %118 = arith.addf %90, %117 : vector<8x32xf32>
    %c0_i32 = arith.constant 0 : i32
    %119 = arith.cmpi eq, %arg1, %c0_i32 : i32
    %120 = arith.extui %119 : i1 to i32
    %c0_i32_36 = arith.constant 0 : i32
    %121 = arith.cmpi ne, %120, %c0_i32_36 : i32
    scf.if %121 {
      %c0_41 = arith.constant 0 : index
      %c0_42 = arith.constant 0 : index
      %125 = vector.load %arg6[%c0_41, %c0_42] : memref<1x32xf32, #tpu.memory_space<vmem>>, vector<1x32xf32>
      %126 = vector.shape_cast %125 : vector<1x32xf32> to vector<1x32xf32>
      %127 = vector.broadcast %126 : vector<1x32xf32> to vector<8x32xf32>
      %c0_43 = arith.constant 0 : index
      %c0_44 = arith.constant 0 : index
      %128 = vector.load %arg7[%c0_43, %c0_44] : memref<8x32xf32, #tpu.memory_space<vmem>>, vector<8x32xf32>
      tpu.vector_store %arg7[%c0_43, %c0_44], %127 {strides = array<i32>} : memref<8x32xf32, #tpu.memory_space<vmem>>, vector<8x32xf32>,
    } else {
    }
    %c0_37 = arith.constant 0 : index
    %c0_38 = arith.constant 0 : index
    %122 = vector.load %arg7[%c0_37, %c0_38] : memref<8x32xf32, #tpu.memory_space<vmem>>, vector<8x32xf32>
    %123 = arith.addf %122, %118 : vector<8x32xf32>
    %c0_39 = arith.constant 0 : index
    %c0_40 = arith.constant 0 : index
    %124 = vector.load %arg7[%c0_39, %c0_40] : memref<8x32xf32, #tpu.memory_space<vmem>>, vector<8x32xf32>
    tpu.vector_store %arg7[%c0_39, %c0_40], %123 {strides = array<i32>} : memref<8x32xf32, #tpu.memory_space<vmem>>, vector<8x32xf32>,
    return
  }
  func.func @transform_0(%arg0: i32, %arg1: i32) -> (i32, i32) {
    %c0_i32 = arith.constant 0 : i32
    %c0_i32_0 = arith.constant 0 : i32
    return %arg0, %c0_i32 : i32, i32
  }
  func.func @transform_1(%arg0: i32, %arg1: i32) -> (i32, i32, i32) {
    %c0_i32 = arith.constant 0 : i32
    %c0_i32_0 = arith.constant 0 : i32
    %c0_i32_1 = arith.constant 0 : i32
    return %arg1, %c0_i32, %c0_i32_0 : i32, i32, i32
  }
  func.func @transform_2(%arg0: i32, %arg1: i32) -> (i32, i32, i32) {
    %c0_i32 = arith.constant 0 : i32
    %c0_i32_0 = arith.constant 0 : i32
    %c0_i32_1 = arith.constant 0 : i32
    return %arg1, %c0_i32, %c0_i32_0 : i32, i32, i32
  }
  func.func @transform_3(%arg0: i32, %arg1: i32) -> (i32, i32, i32) {
    %c0_i32 = arith.constant 0 : i32
    %c0_i32_0 = arith.constant 0 : i32
    %c0_i32_1 = arith.constant 0 : i32
    return %arg1, %c0_i32, %c0_i32_0 : i32, i32, i32
  }
  func.func @transform_4(%arg0: i32, %arg1: i32) -> (i32, i32) {
    %c0_i32 = arith.constant 0 : i32
    %c0_i32_0 = arith.constant 0 : i32
    %c0_i32_1 = arith.constant 0 : i32
    return %c0_i32, %c0_i32_0 : i32, i32
  }
  func.func @transform_5(%arg0: i32, %arg1: i32) -> (i32, i32) {
    %c0_i32 = arith.constant 0 : i32
    %c0_i32_0 = arith.constant 0 : i32
    return %arg0, %c0_i32 : i32, i32
  }
}

</mosaic_0001>

<llo_original>
// kernel: tpu_custom_call.1
$region0: #{tpu_custom_call.1}
  #allocation0 [shape = 'u32[]', space=smem, size = 0x4, offset = 0x4, fixed_abs, tag = 'smem constant byte address 0x4 - core index']
  #allocation1 [shape = 'u32[144,128]{1,0:T(1,128)}', space=vmem, size = 0x12000, scoped, tag = 'internal scratch']
  %s0 = inlined_call_operand.hbm [shape: bf16[16,32], index: 0, kind: input, shape index: {}]
  %s1 = inlined_call_operand.hbm [shape: bf16[1,32,96], index: 1, kind: input, shape index: {}]
  %s2 = inlined_call_operand.vmem [shape: f32[1,1,96], index: 2, kind: input, shape index: {}]
  %s3 = inlined_call_operand.hbm [shape: bf16[1,32,32], index: 3, kind: input, shape index: {}]
  %s4 = inlined_call_operand.vmem [shape: f32[1,32], index: 4, kind: input, shape index: {}]
  %s5 = inlined_call_operand.hbm [shape: f32[16,32], index: 5, kind: output, shape index: {}]
  %s6 = sld [smem:[#allocation0]]
  $region69: #{tpu_custom_call.1} parent=0
    _
  %s8 = ssub.s32 1, %s6
  %s9 = scalar_select 0, %s8, %s6
  $region1: #{tpu_custom_call.1} parent=0
    #allocation2 [shape = 'u8[4096]{0}', space=vmem, size = 0x1000, scoped, tag = 'input window, operand 0']
    #allocation3 [shape = 's32[2]{0}', space=sflag, size = 0x8, scoped, tag = 'scoped memory for tpu_custom_call.1']
    #allocation4 [shape = 's32[2]{0}', space=sflag, size = 0x8, scoped, tag = 'scoped memory for tpu_custom_call.1']
    #allocation5 [shape = 'u8[8192]{0}', space=vmem, size = 0x2000, scoped, tag = 'input window, operand 1, single buffered']
    #allocation6 [shape = 's32[1]{0}', space=sflag, size = 0x4, scoped, tag = 'scoped memory for tpu_custom_call.1']
    #allocation7 [shape = 'u8[8192]{0}', space=vmem, size = 0x2000, scoped, tag = 'input window, operand 3, single buffered']
    #allocation8 [shape = 'u8[8192]{0}', space=vmem, size = 0x2000, scoped, tag = 'output window, operand 0']
    %10 = vsyncpa [#allocation3], 0
    %s11 = scalar_lea.sflag [#allocation3], 1
    %12 = vsyncpa %s11, 0
    %13 = vsyncpa [#allocation6], 0
    %14 = vsyncpa [#allocation4], 0
    %s15 = scalar_lea.sflag [#allocation4], 1
    %16 = vsyncpa %s15, 0
    loop: start=0, step=1, limit=4
    $region2: #{tpu_custom_call.1} parent=1 // loop_pre_header
      _
    $region3: #{tpu_custom_call.1} parent=1 // loop_header
      %s18 = sphi 0, %s22
      %p19 = scmp.ge.s32.totalorder %s18, 4
      %s25 = sphi 0, %s37
      %s26 = sphi 0, %s33
      %s27 = sphi 0, %s25
      %s28 = sphi 0, %s26
      %s29 = sphi 0, %s27
      %s30 = sphi 0, %s28
      %s40 = sphi 0, %s42
      %s43 = sphi 0, %s40
      %s44 = sphi 0, %s43
      %s60 = sphi 0, %s44
      %s66 = sphi 0, %s68
      %s69 = sphi 0, %s66
      %s70 = sphi 0, %s69
      %s86 = sphi 0, %s70
      %s92 = sphi 0, %s94
      %s95 = sphi 0, %s92
      %s96 = sphi 0, %s95
      %s112 = sphi 0, %s96
      %s118 = sphi 0, %s120
      %s121 = sphi 0, %s118
      %s122 = sphi 0, %s121
      %s138 = sphi 0, %s122
      %s142 = sphi 0, %s142
      %s144 = sphi 0, %s142
      %s145 = sphi 0, %s144
      %s159 = sphi 0, %s145
      %s165 = sphi 0, %s167
      %s168 = sphi 0, %s165
      %s169 = sphi 0, %s168
      %s185 = sphi 0, %s169
    $region4: #{tpu_custom_call.1} parent=1 // loop_header_branch
      %21 = sbr.rel (%p19) target = $region8
    $region5: #{tpu_custom_call.1} parent=1 // loop_body
      %s23 = ssub.s32 %s18, 1
      %s24 = ssub.s32 %s18, 2
      %s31 = sadd.s32 1, %s26
      %p32 = scmp.ge.s32.totalorder %s31, 1
      %s33 = scalar_select %p32, 0, %s31
      %s34 = sadd.s32 1, %s25
      %s35 = scalar_select %p32, %s34, %s25
      %p36 = scmp.ge.s32.totalorder %s35, 2
      %s37 = scalar_select %p36, 0, %s35
      %s38 = ssub.s32 %s25, %s37
      %p39 = scmp.eq.s32.totalorder %s38, 0
      %s41 = sadd.s32 %s40, 1
      %s42 = scalar_select %p39, %s40, %s41
      %p45 = pneg %p39
      %p46 = scmp.eq.s32.totalorder %s18, 1
      %p47 = por %p45, %p46
      %p48 = scmp.ne.s32.totalorder %s40, %s43
      %p49 = scmp.eq.s32.totalorder %s18, 0
      %p50 = por %p48, %p49
      %p51 = scmp.ne.s32.totalorder %s40, %s43
      %p52 = scmp.eq.s32.totalorder %s23, 1
      %p53 = por %p51, %p52
      %p54 = scmp.ne.s32.totalorder %s43, %s44
      %p55 = scmp.eq.s32.totalorder %s23, 0
      %p56 = por %p54, %p55
      %p57 = scmp.ne.s32.totalorder %s43, %s44
      %p58 = scmp.eq.s32.totalorder %s24, 1
      %p59 = por %p57, %p58
      %p61 = scmp.ne.s32.totalorder %s44, %s60
      %p62 = scmp.eq.s32.totalorder %s24, 0
      %p63 = por %p61, %p62
      %s64 = ssub.s32 %s26, %s33
      %p65 = scmp.eq.s32.totalorder %s64, 0
      %s67 = sadd.s32 %s66, 1
      %s68 = scalar_select %p65, %s66, %s67
      %p71 = pneg %p65
      %p72 = scmp.eq.s32.totalorder %s18, 1
      %p73 = por %p71, %p72
      %p74 = scmp.ne.s32.totalorder %s66, %s69
      %p75 = scmp.eq.s32.totalorder %s18, 0
      %p76 = por %p74, %p75
      %p77 = scmp.ne.s32.totalorder %s66, %s69
      %p78 = scmp.eq.s32.totalorder %s23, 1
      %p79 = por %p77, %p78
      %p80 = scmp.ne.s32.totalorder %s69, %s70
      %p81 = scmp.eq.s32.totalorder %s23, 0
      %p82 = por %p80, %p81
      %p83 = scmp.ne.s32.totalorder %s69, %s70
      %p84 = scmp.eq.s32.totalorder %s24, 1
      %p85 = por %p83, %p84
      %p87 = scmp.ne.s32.totalorder %s70, %s86
      %p88 = scmp.eq.s32.totalorder %s24, 0
      %p89 = por %p87, %p88
      %s90 = ssub.s32 %s26, %s33
      %p91 = scmp.eq.s32.totalorder %s90, 0
      %s93 = sadd.s32 %s92, 1
      %s94 = scalar_select %p91, %s92, %s93
      %p97 = pneg %p91
      %p98 = scmp.eq.s32.totalorder %s18, 1
      %p99 = por %p97, %p98
      %p100 = scmp.ne.s32.totalorder %s92, %s95
      %p101 = scmp.eq.s32.totalorder %s18, 0
      %p102 = por %p100, %p101
      %p103 = scmp.ne.s32.totalorder %s92, %s95
      %p104 = scmp.eq.s32.totalorder %s23, 1
      %p105 = por %p103, %p104
      %p106 = scmp.ne.s32.totalorder %s95, %s96
      %p107 = scmp.eq.s32.totalorder %s23, 0
      %p108 = por %p106, %p107
      %p109 = scmp.ne.s32.totalorder %s95, %s96
      %p110 = scmp.eq.s32.totalorder %s24, 1
      %p111 = por %p109, %p110
      %p113 = scmp.ne.s32.totalorder %s96, %s112
      %p114 = scmp.eq.s32.totalorder %s24, 0
      %p115 = por %p113, %p114
      %s116 = ssub.s32 %s26, %s33
      %p117 = scmp.eq.s32.totalorder %s116, 0
      %s119 = sadd.s32 %s118, 1
      %s120 = scalar_select %p117, %s118, %s119
      %p123 = pneg %p117
      %p124 = scmp.eq.s32.totalorder %s18, 1
      %p125 = por %p123, %p124
      %p126 = scmp.ne.s32.totalorder %s118, %s121
      %p127 = scmp.eq.s32.totalorder %s18, 0
      %p128 = por %p126, %p127
      %p129 = scmp.ne.s32.totalorder %s118, %s121
      %p130 = scmp.eq.s32.totalorder %s23, 1
      %p131 = por %p129, %p130
      %p132 = scmp.ne.s32.totalorder %s121, %s122
      %p133 = scmp.eq.s32.totalorder %s23, 0
      %p134 = por %p132, %p133
      %p135 = scmp.ne.s32.totalorder %s121, %s122
      %p136 = scmp.eq.s32.totalorder %s24, 1
      %p137 = por %p135, %p136
      %p139 = scmp.ne.s32.totalorder %s122, %s138
      %p140 = scmp.eq.s32.totalorder %s24, 0
      %p141 = por %p139, %p140
      %s143 = sadd.s32 %s142, 1
      %p146 = scmp.eq.s32.totalorder %s18, 1
      %p147 = scmp.ne.s32.totalorder %s142, %s144
      %p148 = scmp.eq.s32.totalorder %s18, 0
      %p149 = por %p147, %p148
      %p150 = scmp.ne.s32.totalorder %s142, %s144
      %p151 = scmp.eq.s32.totalorder %s23, 1
      %p152 = por %p150, %p151
      %p153 = scmp.ne.s32.totalorder %s144, %s145
      %p154 = scmp.eq.s32.totalorder %s23, 0
      %p155 = por %p153, %p154
      %p156 = scmp.ne.s32.totalorder %s144, %s145
      %p157 = scmp.eq.s32.totalorder %s24, 1
      %p158 = por %p156, %p157
      %p160 = scmp.ne.s32.totalorder %s145, %s159
      %p161 = scmp.eq.s32.totalorder %s24, 0
      %p162 = por %p160, %p161
      %s163 = ssub.s32 %s25, %s37
      %p164 = scmp.eq.s32.totalorder %s163, 0
      %s166 = sadd.s32 %s165, 1
      %s167 = scalar_select %p164, %s165, %s166
      %p170 = pneg %p164
      %p171 = scmp.eq.s32.totalorder %s18, 1
      %p172 = por %p170, %p171
      %p173 = scmp.ne.s32.totalorder %s165, %s168
      %p174 = scmp.eq.s32.totalorder %s18, 0
      %p175 = por %p173, %p174
      %p176 = scmp.ne.s32.totalorder %s165, %s168
      %p177 = scmp.eq.s32.totalorder %s23, 1
      %p178 = por %p176, %p177
      %p179 = scmp.ne.s32.totalorder %s168, %s169
      %p180 = scmp.eq.s32.totalorder %s23, 0
      %p181 = por %p179, %p180
      %p182 = scmp.ne.s32.totalorder %s168, %s169
      %p183 = scmp.eq.s32.totalorder %s24, 1
      %p184 = por %p182, %p183
      %p186 = scmp.ne.s32.totalorder %s169, %s185
      %p187 = scmp.eq.s32.totalorder %s24, 0
      %p188 = por %p186, %p187
      %p189 = scmp.le.s32.totalorder 1, %s18
      %p190 = scmp.lt.s32.totalorder %s18, 3
      %p191 = pnand %p189, %p190
      %p192 = pneg %p191
      // Predicated region
      $region9: #{tpu_custom_call.1} parent=5 // pred_check
        _
      $region10: #{tpu_custom_call.1} parent=5 // pred_check_branch
        %194 = sbr.rel (%p191) target = $region12
      $region11: #{tpu_custom_call.1} parent=5 // pred_region
        %s195 = ssub.s32 %s18, 1
        // Predicated region
        $region13: #{tpu_custom_call.1} parent=11 // pred_check
          %p196 = pneg %p82
        $region14: #{tpu_custom_call.1} parent=11 // pred_check_branch
          %198 = sbr.rel (%p196) target = $region16
        $region15: #{tpu_custom_call.1} parent=11 // pred_region
          %s200 = ssub.s32 256, 256
          %201 = vsyncadd [#allocation6], %s200
          %s202 = smul.addr %s28, 4
          %s203 = smul.addr %s202, 64
          %s204 = scalar_lea.hbm %s1, %s203
          %s205 = sshll.u32 [#allocation5], 4
          %s206 = int_to_ptr.vmem [resolvable:$true] %s205
          %211 = dma.hbm_to_vmem [thread:$0]  %s204, 256, %s206, [#allocation6], 64, 64, 4
        $region16: #{tpu_custom_call.1} parent=11 // pred_fallthru
          _
        // Predicated region
        $region17: #{tpu_custom_call.1} parent=11 // pred_check
          %p212 = pneg %p108
        $region18: #{tpu_custom_call.1} parent=11 // pred_check_branch
          %214 = sbr.rel (%p212) target = $region20
        $region19: #{tpu_custom_call.1} parent=11 // pred_region
          %p215 = scmp.lt.s32.totalorder %s28, 0
          %s216 = scalar_select %p215, %s28, 0
          %s217 = scalar_lea.vmem %s2, %s216
        $region20: #{tpu_custom_call.1} parent=11 // pred_fallthru
          _
        // Predicated region
        $region21: #{tpu_custom_call.1} parent=11 // pred_check
          %p218 = pneg %p134
        $region22: #{tpu_custom_call.1} parent=11 // pred_check_branch
          %220 = sbr.rel (%p218) target = $region24
        $region23: #{tpu_custom_call.1} parent=11 // pred_region
          %s222 = ssub.s32 256, 256
          %223 = vsyncadd [#allocation6], %s222
          %s224 = smul.addr %s28, 4
          %s225 = smul.addr %s224, 64
          %s226 = scalar_lea.hbm %s3, %s225
          %s227 = sshll.u32 [#allocation7], 4
          %s228 = int_to_ptr.vmem [resolvable:$true] %s227
          %233 = dma.hbm_to_vmem [thread:$0]  %s226, 256, %s228, [#allocation6], 64, 64, 4
        $region24: #{tpu_custom_call.1} parent=11 // pred_fallthru
          _
        // Predicated region
        $region25: #{tpu_custom_call.1} parent=11 // pred_check
          %p234 = pneg %p155
        $region26: #{tpu_custom_call.1} parent=11 // pred_check_branch
          %236 = sbr.rel (%p234) target = $region28
        $region27: #{tpu_custom_call.1} parent=11 // pred_region
          _
        $region28: #{tpu_custom_call.1} parent=11 // pred_fallthru
          _
      $region12: #{tpu_custom_call.1} parent=5 // pred_fallthru
        _
      %p237 = scmp.lt.s32.totalorder %s18, 2
      // Predicated region
      $region29: #{tpu_custom_call.1} parent=5 // pred_check
        %p238 = pneg %p237
      $region30: #{tpu_custom_call.1} parent=5 // pred_check_branch
        %240 = sbr.rel (%p238) target = $region32
      $region31: #{tpu_custom_call.1} parent=5 // pred_region
        // Predicated region
        $region33: #{tpu_custom_call.1} parent=31 // pred_check
          %p241 = pneg %p50
        $region34: #{tpu_custom_call.1} parent=31 // pred_check_branch
          %243 = sbr.rel (%p241) target = $region36
        $region35: #{tpu_custom_call.1} parent=31 // pred_region
          %s244 = sand.u32 %s40, 1
          %s245 = scalar_lea.sflag [#allocation3], %s244
          %s246 = sand.u32 %s40, 1
          %s247 = smul.addr %s246, 4
          %s248 = scalar_lea.vmem [#allocation2], %s247
          %s250 = ssub.s32 64, 64
          %251 = vsyncadd %s245, %s250
          %s252 = smul.addr %s25, 64
          %s253 = scalar_lea.hbm %s0, %s252
          %s255 = sshll.u32 %s248, 4
          %s256 = int_to_ptr.vmem [resolvable:$true] %s255
          %258 = dma.hbm_to_vmem [thread:$0]  %s253, 64, %s256, %s245
        $region36: #{tpu_custom_call.1} parent=31 // pred_fallthru
          _
      $region32: #{tpu_custom_call.1} parent=5 // pred_fallthru
        _
      %p259 = scmp.le.s32.totalorder 1, %s18
      %p260 = scmp.lt.s32.totalorder %s18, 3
      %p261 = pnand %p259, %p260
      %p262 = pneg %p261
      // Predicated region
      $region37: #{tpu_custom_call.1} parent=5 // pred_check
        _
      $region38: #{tpu_custom_call.1} parent=5 // pred_check_branch
        %264 = sbr.rel (%p261) target = $region40
      $region39: #{tpu_custom_call.1} parent=5 // pred_region
        %s265 = ssub.s32 %s18, 1
        %s266 = sand.u32 %s43, 1
        %s267 = scalar_lea.sflag [#allocation3], %s266
        %s268 = sand.u32 %s43, 1
        %s269 = smul.addr %s268, 4
        %s270 = scalar_lea.vmem [#allocation2], %s269
        // Predicated region
        $region41: #{tpu_custom_call.1} parent=39 // pred_check
          %p271 = pneg %p56
        $region42: #{tpu_custom_call.1} parent=39 // pred_check_branch
          %273 = sbr.rel (%p271) target = $region44
        $region43: #{tpu_custom_call.1} parent=39 // pred_region
          %274 = dma.done %s267, 64
        $region44: #{tpu_custom_call.1} parent=39 // pred_fallthru
          _
        // Predicated region
        $region45: #{tpu_custom_call.1} parent=39 // pred_check
          %p275 = pneg %p82
        $region46: #{tpu_custom_call.1} parent=39 // pred_check_branch
          %277 = sbr.rel (%p275) target = $region48
        $region47: #{tpu_custom_call.1} parent=39 // pred_region
          %278 = dma.done [#allocation6], 256
        $region48: #{tpu_custom_call.1} parent=39 // pred_fallthru
          _
        // Predicated region
        $region49: #{tpu_custom_call.1} parent=39 // pred_check
          %p279 = pneg %p134
        $region50: #{tpu_custom_call.1} parent=39 // pred_check_branch
          %281 = sbr.rel (%p279) target = $region52
        $region51: #{tpu_custom_call.1} parent=39 // pred_region
          %282 = dma.done [#allocation6], 256
        $region52: #{tpu_custom_call.1} parent=39 // pred_fallthru
          _
        %s283 = sand.u32 %s43, 1
        %s284 = scalar_lea.sflag [#allocation3], %s283
        %s285 = sand.u32 %s43, 1
        %s286 = smul.addr %s285, 4
        %s287 = scalar_lea.vmem [#allocation2], %s286
        %p288 = pneg %p56
        %p289 = pneg %p53
        %p290 = pneg %p82
        %p291 = pneg %p79
        %p292 = scmp.lt.s32.totalorder %s28, 0
        %s293 = scalar_select %p292, %s28, 0
        %s294 = scalar_lea.vmem %s2, %s293
        %p295 = pneg %p108
        %p296 = pneg %p105
        %p297 = pneg %p134
        %p298 = pneg %p131
        %p299 = pneg %p155
        %p300 = pneg %p152
        %p301 = pneg %p181
        %p302 = pneg %p178
        %s303 = sand.u32 %s168, 1
        %s304 = scalar_lea.sflag [#allocation4], %s303
        %s305 = sand.u32 %s168, 1
        %s306 = smul.addr %s305, 8
        %s307 = scalar_lea.vmem [#allocation8], %s306
        %p308 = scmp.lt.s32.totalorder %s28, 0
        %s309 = scalar_select %p308, %s28, 0
        %s310 = scalar_lea.vmem %s2, %s309
        %v312 = vld [vmem:[%s270] sm:$0xf]
        %v313 = vld [vmem:[#allocation5] sm:$0xf]
        %v314 = vld [vmem:[#allocation5 + $0x4] sm:$0xf]
        %v315 = vld [vmem:[#allocation5 + $0x8] sm:$0xf]
        %v316 = vld [vmem:[#allocation5 + $0xc] sm:$0xf]
        %v317 = vld [vmem:[%s310] sm:$0x1]
        %v319 = vlaneseq
        %v320 = vshrl.u32 %v319, 7
        %v321 = vsub.s32 0, %v320
        %v322 = vrot.slane %v317, %v321
        %v328 = vunpack.c.l.b16 %v313
        %v329 = vunpack.c.l.b16 %v314
        %v330 = vunpack.c.l.b16 %v315
        %v331 = vunpack.c.l.b16 %v316
        %v332 = vpack.c.b16 %v329, %v328
        %v333 = vpack.c.b16 %v331, %v330
        %vm336 = vcmask 261120
        %v338 = vsel %vm336, %v312, 0
        %340 = vmatprep.subr.bf16.mxu0 0
        %341 = vmatpush1.bf16.msra.mxu0 0
        %342 = vmatprep.subr.bf16.mxu0 0
        %343 = vmatpush1.bf16.msra.mxu0 0
        %344 = vmatprep.subr.bf16.mxu0 0
        %345 = vmatpush1.bf16.msra.mxu0 0
        %346 = vmatprep.subr.bf16.mxu0 0
        %347 = vmatpush1.bf16.msra.mxu0 0
        %348 = vmatprep.subr.bf16.mxu0 0
        %349 = vmatpush1.bf16.msra.mxu0 0
        %350 = vmatprep.subr.bf16.mxu0 0
        %351 = vmatpush1.bf16.msra.mxu0 0
        %352 = vmatprep.subr.bf16.mxu0 0
        %353 = vmatpush1.bf16.msra.mxu0 %v333
        %354 = vmatprep.subr.bf16.mxu0 0
        %355 = vmatpush1.bf16.msra.mxu0 %v332
        %356 = vmatprep.subr.bf16.mxu0 0
        %357 = vmatpush2.bf16.msra.mxu0 0
        %358 = vmatprep.subr.bf16.mxu0 0
        %359 = vmatpush2.bf16.msra.mxu0 0
        %360 = vmatprep.subr.bf16.mxu0 0
        %361 = vmatpush2.bf16.msra.mxu0 0
        %362 = vmatprep.subr.bf16.mxu0 0
        %363 = vmatpush2.bf16.msra.mxu0 0
        %364 = vmatprep.subr.bf16.mxu0 0
        %365 = vmatpush2.bf16.msra.mxu0 0
        %366 = vmatprep.subr.bf16.mxu0 0
        %367 = vmatpush2.bf16.msra.mxu0 0
        %368 = vmatprep.subr.bf16.mxu0 0
        %369 = vmatpush2.bf16.msra.mxu0 0
        %370 = vmatprep.subr.bf16.mxu0 0
        %371 = vmatpush2.bf16.msra.mxu0 0
        %372 = vmatprep.mubr.bf16.mxu0 0
        %373 = vmatmul.mubr.bf16.gmra.mxu0 %v338
        %v374 = vpop.f32.mrf.mxu0
        %v375 = vadd.f32 %v322, %v374
        %v376 = vpop.f32.mrf.mxu0
        %v377 = vpop.f32.mrf.mxu0
        %v378 = vpop.f32.mrf.mxu0
        %379 = vdwg.mxu0
        %v380 = vpack.c.bf16 %v375, %v375
        %382 = vrot.lane.b32.xlu0 %v380, 120
        %v383 = vpop.permute.xlu0 %382
        %vm384 = vcmask 64512
        %v386 = vsel %vm384, %v380, 0
        %v389 = vsel %vm384, %v383, 0
        %391 = vmatprep.subr.bf16.mxu0 0
        %392 = vmatpush1.bf16.xpose.msra.mxu0 0
        %393 = vmatprep.subr.bf16.mxu0 0
        %394 = vmatpush1.bf16.xpose.msra.mxu0 0
        %395 = vmatprep.subr.bf16.mxu0 0
        %396 = vmatpush1.bf16.xpose.msra.mxu0 0
        %397 = vmatprep.subr.bf16.mxu0 0
        %398 = vmatpush1.bf16.xpose.msra.mxu0 0
        %399 = vmatprep.subr.bf16.mxu0 0
        %400 = vmatpush1.bf16.xpose.msra.mxu0 0
        %401 = vmatprep.subr.bf16.mxu0 0
        %402 = vmatpush1.bf16.xpose.msra.mxu0 0
        %403 = vmatprep.subr.bf16.mxu0 0
        %404 = vmatpush1.bf16.xpose.msra.mxu0 0
        %405 = vmatprep.subr.bf16.mxu0 0
        %406 = vmatpush1.bf16.xpose.msra.mxu0 %v389
        %407 = vmatprep.subr.bf16.mxu0 0
        %408 = vmatpush2.bf16.xpose.msra.mxu0 0
        %409 = vmatprep.subr.bf16.mxu0 0
        %410 = vmatpush2.bf16.xpose.msra.mxu0 0
        %411 = vmatprep.subr.bf16.mxu0 0
        %412 = vmatpush2.bf16.xpose.msra.mxu0 0
        %413 = vmatprep.subr.bf16.mxu0 0
        %414 = vmatpush2.bf16.xpose.msra.mxu0 0
        %415 = vmatprep.subr.bf16.mxu0 0
        %416 = vmatpush2.bf16.xpose.msra.mxu0 0
        %417 = vmatprep.subr.bf16.mxu0 0
        %418 = vmatpush2.bf16.xpose.msra.mxu0 0
        %419 = vmatprep.subr.bf16.mxu0 0
        %420 = vmatpush2.bf16.xpose.msra.mxu0 0
        %421 = vmatprep.subr.bf16.mxu0 0
        %422 = vmatpush2.bf16.xpose.msra.mxu0 0
        %423 = vmatprep.mubr.bf16.mxu0 0
        %424 = vmatmul.mubr.bf16.gmra.mxu0 %v386
        %v425 = vpop.f32.mrf.mxu0
        %v426 = vadd.f32 0.0, %v425
        %v427 = vpop.f32.mrf.mxu0
        %v428 = vpop.f32.mrf.mxu0
        %v429 = vpop.f32.mrf.mxu0
        %430 = vdwg.mxu0
        %v431 = vsel %vm384, %v426, -inf
        %432 = vmax.xlane.f32.xlu0 %v431
        %v433 = vpop.xlane.xlu0 %432
        %v434 = vsub.f32 %v426, %v433
        %v435 = vmul.f32 %v434, 1.442695
        %v436 = vpow.pop %v435
        %v437 = vsel %vm384, %v436, 0.0
        %438 = vadd.xlane.f32.xlu0 %v437
        %v439 = vpop.xlane.xlu0 %438
        %v440 = vpack.c.bf16 %v436, %v436
        %441 = vrot.lane.b32.xlu0 %v380, 112
        %v442 = vpop.permute.xlu0 %441
        %v444 = vsel %vm384, %v440, 0
        %vm446 = vcmask 1043456
        %v448 = vsel %vm446, %v442, 0
        %450 = vmatprep.subr.bf16.mxu0 0
        %451 = vmatpush1.bf16.msra.mxu0 0
        %452 = vmatprep.subr.bf16.mxu0 0
        %453 = vmatpush1.bf16.msra.mxu0 0
        %454 = vmatprep.subr.bf16.mxu0 0
        %455 = vmatpush1.bf16.msra.mxu0 0
        %456 = vmatprep.subr.bf16.mxu0 0
        %457 = vmatpush1.bf16.msra.mxu0 0
        %458 = vmatprep.subr.bf16.mxu0 0
        %459 = vmatpush1.bf16.msra.mxu0 0
        %460 = vmatprep.subr.bf16.mxu0 0
        %461 = vmatpush1.bf16.msra.mxu0 0
        %462 = vmatprep.subr.bf16.mxu0 0
        %463 = vmatpush1.bf16.msra.mxu0 0
        %464 = vmatprep.subr.bf16.mxu0 0
        %465 = vmatpush1.bf16.msra.mxu0 %v448
        %466 = vmatprep.subr.bf16.mxu0 0
        %467 = vmatpush2.bf16.msra.mxu0 0
        %468 = vmatprep.subr.bf16.mxu0 0
        %469 = vmatpush2.bf16.msra.mxu0 0
        %470 = vmatprep.subr.bf16.mxu0 0
        %471 = vmatpush2.bf16.msra.mxu0 0
        %472 = vmatprep.subr.bf16.mxu0 0
        %473 = vmatpush2.bf16.msra.mxu0 0
        %474 = vmatprep.subr.bf16.mxu0 0
        %475 = vmatpush2.bf16.msra.mxu0 0
        %476 = vmatprep.subr.bf16.mxu0 0
        %477 = vmatpush2.bf16.msra.mxu0 0
        %478 = vmatprep.subr.bf16.mxu0 0
        %479 = vmatpush2.bf16.msra.mxu0 0
        %480 = vmatprep.subr.bf16.mxu0 0
        %481 = vmatpush2.bf16.msra.mxu0 0
        %482 = vmatprep.mubr.bf16.mxu0 0
        %483 = vmatmul.mubr.bf16.gmra.mxu0 %v444
        %v484 = vpop.f32.mrf.mxu0
        %v485 = vadd.f32 0.0, %v484
        %v486 = vpop.f32.mrf.mxu0
        %v487 = vpop.f32.mrf.mxu0
        %v488 = vpop.f32.mrf.mxu0
        %489 = vdwg.mxu0
        %v490 = vrcp.pop %v439
        %v491 = vmul.f32 %v485, %v490
        %v492 = vpack.c.bf16 %v491, %v491
        %v493 = vld [vmem:[#allocation7] sm:$0xf]
        %494 = vrot.lane.b32.xlu0 %v380, 104
        %v495 = vpop.permute.xlu0 %494
        %496 = vrot.lane.b32.xlu0 %v380, 96
        %v497 = vpop.permute.xlu0 %496
        %v499 = vsel %vm384, %v495, 0
        %v502 = vsel %vm384, %v497, 0
        %504 = vmatprep.subr.bf16.mxu0 0
        %505 = vmatpush1.bf16.xpose.msra.mxu0 0
        %506 = vmatprep.subr.bf16.mxu0 0
        %507 = vmatpush1.bf16.xpose.msra.mxu0 0
        %508 = vmatprep.subr.bf16.mxu0 0
        %509 = vmatpush1.bf16.xpose.msra.mxu0 0
        %510 = vmatprep.subr.bf16.mxu0 0
        %511 = vmatpush1.bf16.xpose.msra.mxu0 0
        %512 = vmatprep.subr.bf16.mxu0 0
        %513 = vmatpush1.bf16.xpose.msra.mxu0 0
        %514 = vmatprep.subr.bf16.mxu0 0
        %515 = vmatpush1.bf16.xpose.msra.mxu0 0
        %516 = vmatprep.subr.bf16.mxu0 0
        %517 = vmatpush1.bf16.xpose.msra.mxu0 0
        %518 = vmatprep.subr.bf16.mxu0 0
        %519 = vmatpush1.bf16.xpose.msra.mxu0 %v502
        %520 = vmatprep.subr.bf16.mxu0 0
        %521 = vmatpush2.bf16.xpose.msra.mxu0 0
        %522 = vmatprep.subr.bf16.mxu0 0
        %523 = vmatpush2.bf16.xpose.msra.mxu0 0
        %524 = vmatprep.subr.bf16.mxu0 0
        %525 = vmatpush2.bf16.xpose.msra.mxu0 0
        %526 = vmatprep.subr.bf16.mxu0 0
        %527 = vmatpush2.bf16.xpose.msra.mxu0 0
        %528 = vmatprep.subr.bf16.mxu0 0
        %529 = vmatpush2.bf16.xpose.msra.mxu0 0
        %530 = vmatprep.subr.bf16.mxu0 0
        %531 = vmatpush2.bf16.xpose.msra.mxu0 0
        %532 = vmatprep.subr.bf16.mxu0 0
        %533 = vmatpush2.bf16.xpose.msra.mxu0 0
        %534 = vmatprep.subr.bf16.mxu0 0
        %535 = vmatpush2.bf16.xpose.msra.mxu0 0
        %536 = vmatprep.mubr.bf16.mxu0 0
        %537 = vmatmul.mubr.bf16.gmra.mxu0 %v499
        %v538 = vpop.f32.mrf.mxu0
        %v539 = vadd.f32 0.0, %v538
        %v540 = vpop.f32.mrf.mxu0
        %v541 = vpop.f32.mrf.mxu0
        %v542 = vpop.f32.mrf.mxu0
        %543 = vdwg.mxu0
        %v544 = vsel %vm384, %v539, -inf
        %545 = vmax.xlane.f32.xlu0 %v544
        %v546 = vpop.xlane.xlu0 %545
        %v547 = vsub.f32 %v539, %v546
        %v548 = vmul.f32 %v547, 1.442695
        %v549 = vpow.pop %v548
        %v550 = vsel %vm384, %v549, 0.0
        %551 = vadd.xlane.f32.xlu0 %v550
        %v552 = vpop.xlane.xlu0 %551
        %v553 = vpack.c.bf16 %v549, %v549
        %554 = vrot.lane.b32.xlu0 %v380, 88
        %v555 = vpop.permute.xlu0 %554
        %v557 = vsel %vm384, %v553, 0
        %v560 = vsel %vm446, %v555, 0
        %562 = vmatprep.subr.bf16.mxu0 0
        %563 = vmatpush1.bf16.msra.mxu0 0
        %564 = vmatprep.subr.bf16.mxu0 0
        %565 = vmatpush1.bf16.msra.mxu0 0
        %566 = vmatprep.subr.bf16.mxu0 0
        %567 = vmatpush1.bf16.msra.mxu0 0
        %568 = vmatprep.subr.bf16.mxu0 0
        %569 = vmatpush1.bf16.msra.mxu0 0
        %570 = vmatprep.subr.bf16.mxu0 0
        %571 = vmatpush1.bf16.msra.mxu0 0
        %572 = vmatprep.subr.bf16.mxu0 0
        %573 = vmatpush1.bf16.msra.mxu0 0
        %574 = vmatprep.subr.bf16.mxu0 0
        %575 = vmatpush1.bf16.msra.mxu0 0
        %576 = vmatprep.subr.bf16.mxu0 0
        %577 = vmatpush1.bf16.msra.mxu0 %v560
        %578 = vmatprep.subr.bf16.mxu0 0
        %579 = vmatpush2.bf16.msra.mxu0 0
        %580 = vmatprep.subr.bf16.mxu0 0
        %581 = vmatpush2.bf16.msra.mxu0 0
        %582 = vmatprep.subr.bf16.mxu0 0
        %583 = vmatpush2.bf16.msra.mxu0 0
        %584 = vmatprep.subr.bf16.mxu0 0
        %585 = vmatpush2.bf16.msra.mxu0 0
        %586 = vmatprep.subr.bf16.mxu0 0
        %587 = vmatpush2.bf16.msra.mxu0 0
        %588 = vmatprep.subr.bf16.mxu0 0
        %589 = vmatpush2.bf16.msra.mxu0 0
        %590 = vmatprep.subr.bf16.mxu0 0
        %591 = vmatpush2.bf16.msra.mxu0 0
        %592 = vmatprep.subr.bf16.mxu0 0
        %593 = vmatpush2.bf16.msra.mxu0 0
        %594 = vmatprep.mubr.bf16.mxu0 0
        %595 = vmatmul.mubr.bf16.gmra.mxu0 %v557
        %v596 = vpop.f32.mrf.mxu0
        %v597 = vadd.f32 0.0, %v596
        %v598 = vpop.f32.mrf.mxu0
        %v599 = vpop.f32.mrf.mxu0
        %v600 = vpop.f32.mrf.mxu0
        %601 = vdwg.mxu0
        %v602 = vrcp.pop %v552
        %v603 = vmul.f32 %v597, %v602
        %v604 = vpack.c.bf16 %v603, %v603
        %v605 = vld [vmem:[#allocation7 + $0x4] sm:$0xf]
        %v607 = vsel %vm384, %v604, 0
        %v610 = vsel %vm446, %v605, 0
        %612 = vmatprep.subr.bf16.mxu0 0
        %613 = vmatpush1.bf16.msra.mxu0 0
        %614 = vmatprep.subr.bf16.mxu0 0
        %615 = vmatpush1.bf16.msra.mxu0 0
        %616 = vmatprep.subr.bf16.mxu0 0
        %617 = vmatpush1.bf16.msra.mxu0 0
        %618 = vmatprep.subr.bf16.mxu0 0
        %619 = vmatpush1.bf16.msra.mxu0 0
        %620 = vmatprep.subr.bf16.mxu0 0
        %621 = vmatpush1.bf16.msra.mxu0 0
        %622 = vmatprep.subr.bf16.mxu0 0
        %623 = vmatpush1.bf16.msra.mxu0 0
        %624 = vmatprep.subr.bf16.mxu0 0
        %625 = vmatpush1.bf16.msra.mxu0 0
        %626 = vmatprep.subr.bf16.mxu0 0
        %627 = vmatpush1.bf16.msra.mxu0 %v610
        %628 = vmatprep.subr.bf16.mxu0 0
        %629 = vmatpush2.bf16.msra.mxu0 0
        %630 = vmatprep.subr.bf16.mxu0 0
        %631 = vmatpush2.bf16.msra.mxu0 0
        %632 = vmatprep.subr.bf16.mxu0 0
        %633 = vmatpush2.bf16.msra.mxu0 0
        %634 = vmatprep.subr.bf16.mxu0 0
        %635 = vmatpush2.bf16.msra.mxu0 0
        %636 = vmatprep.subr.bf16.mxu0 0
        %637 = vmatpush2.bf16.msra.mxu0 0
        %638 = vmatprep.subr.bf16.mxu0 0
        %639 = vmatpush2.bf16.msra.mxu0 0
        %640 = vmatprep.subr.bf16.mxu0 0
        %641 = vmatpush2.bf16.msra.mxu0 0
        %642 = vmatprep.subr.bf16.mxu0 0
        %643 = vmatpush2.bf16.msra.mxu0 0
        %644 = vmatprep.mubr.bf16.mxu0 0
        %645 = vmatmul.mubr.bf16.gmra.mxu0 %v607
        %v646 = vpop.f32.mrf.mxu0
        %v647 = vadd.f32 0.0, %v646
        %v648 = vpop.f32.mrf.mxu0
        %v649 = vpop.f32.mrf.mxu0
        %v650 = vpop.f32.mrf.mxu0
        %651 = vdwg.mxu0
        %v653 = vsel %vm384, %v492, 0
        %v656 = vsel %vm446, %v493, 0
        %658 = vmatprep.subr.bf16.mxu0 0
        %659 = vmatpush1.bf16.msra.mxu0 0
        %660 = vmatprep.subr.bf16.mxu0 0
        %661 = vmatpush1.bf16.msra.mxu0 0
        %662 = vmatprep.subr.bf16.mxu0 0
        %663 = vmatpush1.bf16.msra.mxu0 0
        %664 = vmatprep.subr.bf16.mxu0 0
        %665 = vmatpush1.bf16.msra.mxu0 0
        %666 = vmatprep.subr.bf16.mxu0 0
        %667 = vmatpush1.bf16.msra.mxu0 0
        %668 = vmatprep.subr.bf16.mxu0 0
        %669 = vmatpush1.bf16.msra.mxu0 0
        %670 = vmatprep.subr.bf16.mxu0 0
        %671 = vmatpush1.bf16.msra.mxu0 0
        %672 = vmatprep.subr.bf16.mxu0 0
        %673 = vmatpush1.bf16.msra.mxu0 %v656
        %674 = vmatprep.subr.bf16.mxu0 0
        %675 = vmatpush2.bf16.msra.mxu0 0
        %676 = vmatprep.subr.bf16.mxu0 0
        %677 = vmatpush2.bf16.msra.mxu0 0
        %678 = vmatprep.subr.bf16.mxu0 0
        %679 = vmatpush2.bf16.msra.mxu0 0
        %680 = vmatprep.subr.bf16.mxu0 0
        %681 = vmatpush2.bf16.msra.mxu0 0
        %682 = vmatprep.subr.bf16.mxu0 0
        %683 = vmatpush2.bf16.msra.mxu0 0
        %684 = vmatprep.subr.bf16.mxu0 0
        %685 = vmatpush2.bf16.msra.mxu0 0
        %686 = vmatprep.subr.bf16.mxu0 0
        %687 = vmatpush2.bf16.msra.mxu0 0
        %688 = vmatprep.subr.bf16.mxu0 0
        %689 = vmatpush2.bf16.msra.mxu0 0
        %690 = vmatprep.mubr.bf16.mxu0 0
        %691 = vmatmul.mubr.bf16.gmra.mxu0 %v653
        %v692 = vpop.f32.mrf.mxu0
        %v693 = vadd.f32 %v647, %v692
        %v694 = vpop.f32.mrf.mxu0
        %v695 = vpop.f32.mrf.mxu0
        %v696 = vpop.f32.mrf.mxu0
        %697 = vdwg.mxu0
        %698 = vrot.lane.b32.xlu0 %v380, 80
        %v699 = vpop.permute.xlu0 %698
        %700 = vrot.lane.b32.xlu0 %v380, 72
        %v701 = vpop.permute.xlu0 %700
        %v703 = vsel %vm384, %v699, 0
        %v706 = vsel %vm384, %v701, 0
        %708 = vmatprep.subr.bf16.mxu0 0
        %709 = vmatpush1.bf16.xpose.msra.mxu0 0
        %710 = vmatprep.subr.bf16.mxu0 0
        %711 = vmatpush1.bf16.xpose.msra.mxu0 0
        %712 = vmatprep.subr.bf16.mxu0 0
        %713 = vmatpush1.bf16.xpose.msra.mxu0 0
        %714 = vmatprep.subr.bf16.mxu0 0
        %715 = vmatpush1.bf16.xpose.msra.mxu0 0
        %716 = vmatprep.subr.bf16.mxu0 0
        %717 = vmatpush1.bf16.xpose.msra.mxu0 0
        %718 = vmatprep.subr.bf16.mxu0 0
        %719 = vmatpush1.bf16.xpose.msra.mxu0 0
        %720 = vmatprep.subr.bf16.mxu0 0
        %721 = vmatpush1.bf16.xpose.msra.mxu0 0
        %722 = vmatprep.subr.bf16.mxu0 0
        %723 = vmatpush1.bf16.xpose.msra.mxu0 %v706
        %724 = vmatprep.subr.bf16.mxu0 0
        %725 = vmatpush2.bf16.xpose.msra.mxu0 0
        %726 = vmatprep.subr.bf16.mxu0 0
        %727 = vmatpush2.bf16.xpose.msra.mxu0 0
        %728 = vmatprep.subr.bf16.mxu0 0
        %729 = vmatpush2.bf16.xpose.msra.mxu0 0
        %730 = vmatprep.subr.bf16.mxu0 0
        %731 = vmatpush2.bf16.xpose.msra.mxu0 0
        %732 = vmatprep.subr.bf16.mxu0 0
        %733 = vmatpush2.bf16.xpose.msra.mxu0 0
        %734 = vmatprep.subr.bf16.mxu0 0
        %735 = vmatpush2.bf16.xpose.msra.mxu0 0
        %736 = vmatprep.subr.bf16.mxu0 0
        %737 = vmatpush2.bf16.xpose.msra.mxu0 0
        %738 = vmatprep.subr.bf16.mxu0 0
        %739 = vmatpush2.bf16.xpose.msra.mxu0 0
        %740 = vmatprep.mubr.bf16.mxu0 0
        %741 = vmatmul.mubr.bf16.gmra.mxu0 %v703
        %v742 = vpop.f32.mrf.mxu0
        %v743 = vadd.f32 0.0, %v742
        %v744 = vpop.f32.mrf.mxu0
        %v745 = vpop.f32.mrf.mxu0
        %v746 = vpop.f32.mrf.mxu0
        %747 = vdwg.mxu0
        %v748 = vsel %vm384, %v743, -inf
        %749 = vmax.xlane.f32.xlu0 %v748
        %v750 = vpop.xlane.xlu0 %749
        %v751 = vsub.f32 %v743, %v750
        %v752 = vmul.f32 %v751, 1.442695
        %v753 = vpow.pop %v752
        %v754 = vsel %vm384, %v753, 0.0
        %755 = vadd.xlane.f32.xlu0 %v754
        %v756 = vpop.xlane.xlu0 %755
        %v757 = vpack.c.bf16 %v753, %v753
        %758 = vrot.lane.b32.xlu0 %v380, 64
        %v759 = vpop.permute.xlu0 %758
        %v761 = vsel %vm384, %v757, 0
        %v764 = vsel %vm446, %v759, 0
        %766 = vmatprep.subr.bf16.mxu0 0
        %767 = vmatpush1.bf16.msra.mxu0 0
        %768 = vmatprep.subr.bf16.mxu0 0
        %769 = vmatpush1.bf16.msra.mxu0 0
        %770 = vmatprep.subr.bf16.mxu0 0
        %771 = vmatpush1.bf16.msra.mxu0 0
        %772 = vmatprep.subr.bf16.mxu0 0
        %773 = vmatpush1.bf16.msra.mxu0 0
        %774 = vmatprep.subr.bf16.mxu0 0
        %775 = vmatpush1.bf16.msra.mxu0 0
        %776 = vmatprep.subr.bf16.mxu0 0
        %777 = vmatpush1.bf16.msra.mxu0 0
        %778 = vmatprep.subr.bf16.mxu0 0
        %779 = vmatpush1.bf16.msra.mxu0 0
        %780 = vmatprep.subr.bf16.mxu0 0
        %781 = vmatpush1.bf16.msra.mxu0 %v764
        %782 = vmatprep.subr.bf16.mxu0 0
        %783 = vmatpush2.bf16.msra.mxu0 0
        %784 = vmatprep.subr.bf16.mxu0 0
        %785 = vmatpush2.bf16.msra.mxu0 0
        %786 = vmatprep.subr.bf16.mxu0 0
        %787 = vmatpush2.bf16.msra.mxu0 0
        %788 = vmatprep.subr.bf16.mxu0 0
        %789 = vmatpush2.bf16.msra.mxu0 0
        %790 = vmatprep.subr.bf16.mxu0 0
        %791 = vmatpush2.bf16.msra.mxu0 0
        %792 = vmatprep.subr.bf16.mxu0 0
        %793 = vmatpush2.bf16.msra.mxu0 0
        %794 = vmatprep.subr.bf16.mxu0 0
        %795 = vmatpush2.bf16.msra.mxu0 0
        %796 = vmatprep.subr.bf16.mxu0 0
        %797 = vmatpush2.bf16.msra.mxu0 0
        %798 = vmatprep.mubr.bf16.mxu0 0
        %799 = vmatmul.mubr.bf16.gmra.mxu0 %v761
        %v800 = vpop.f32.mrf.mxu0
        %v801 = vadd.f32 0.0, %v800
        %v802 = vpop.f32.mrf.mxu0
        %v803 = vpop.f32.mrf.mxu0
        %v804 = vpop.f32.mrf.mxu0
        %805 = vdwg.mxu0
        %v806 = vrcp.pop %v756
        %v807 = vmul.f32 %v801, %v806
        %v808 = vpack.c.bf16 %v807, %v807
        %v809 = vld [vmem:[#allocation7 + $0x8] sm:$0xf]
        %v811 = vsel %vm384, %v808, 0
        %v814 = vsel %vm446, %v809, 0
        %816 = vmatprep.subr.bf16.mxu0 0
        %817 = vmatpush1.bf16.msra.mxu0 0
        %818 = vmatprep.subr.bf16.mxu0 0
        %819 = vmatpush1.bf16.msra.mxu0 0
        %820 = vmatprep.subr.bf16.mxu0 0
        %821 = vmatpush1.bf16.msra.mxu0 0
        %822 = vmatprep.subr.bf16.mxu0 0
        %823 = vmatpush1.bf16.msra.mxu0 0
        %824 = vmatprep.subr.bf16.mxu0 0
        %825 = vmatpush1.bf16.msra.mxu0 0
        %826 = vmatprep.subr.bf16.mxu0 0
        %827 = vmatpush1.bf16.msra.mxu0 0
        %828 = vmatprep.subr.bf16.mxu0 0
        %829 = vmatpush1.bf16.msra.mxu0 0
        %830 = vmatprep.subr.bf16.mxu0 0
        %831 = vmatpush1.bf16.msra.mxu0 %v814
        %832 = vmatprep.subr.bf16.mxu0 0
        %833 = vmatpush2.bf16.msra.mxu0 0
        %834 = vmatprep.subr.bf16.mxu0 0
        %835 = vmatpush2.bf16.msra.mxu0 0
        %836 = vmatprep.subr.bf16.mxu0 0
        %837 = vmatpush2.bf16.msra.mxu0 0
        %838 = vmatprep.subr.bf16.mxu0 0
        %839 = vmatpush2.bf16.msra.mxu0 0
        %840 = vmatprep.subr.bf16.mxu0 0
        %841 = vmatpush2.bf16.msra.mxu0 0
        %842 = vmatprep.subr.bf16.mxu0 0
        %843 = vmatpush2.bf16.msra.mxu0 0
        %844 = vmatprep.subr.bf16.mxu0 0
        %845 = vmatpush2.bf16.msra.mxu0 0
        %846 = vmatprep.subr.bf16.mxu0 0
        %847 = vmatpush2.bf16.msra.mxu0 0
        %848 = vmatprep.mubr.bf16.mxu0 0
        %849 = vmatmul.mubr.bf16.gmra.mxu0 %v811
        %v850 = vpop.f32.mrf.mxu0
        %v851 = vadd.f32 0.0, %v850
        %v852 = vpop.f32.mrf.mxu0
        %v853 = vpop.f32.mrf.mxu0
        %v854 = vpop.f32.mrf.mxu0
        %855 = vdwg.mxu0
        %v856 = vadd.f32 %v693, %v851
        %857 = vrot.lane.b32.xlu0 %v380, 56
        %v858 = vpop.permute.xlu0 %857
        %859 = vrot.lane.b32.xlu0 %v380, 48
        %v860 = vpop.permute.xlu0 %859
        %v862 = vsel %vm384, %v858, 0
        %v865 = vsel %vm384, %v860, 0
        %867 = vmatprep.subr.bf16.mxu0 0
        %868 = vmatpush1.bf16.xpose.msra.mxu0 0
        %869 = vmatprep.subr.bf16.mxu0 0
        %870 = vmatpush1.bf16.xpose.msra.mxu0 0
        %871 = vmatprep.subr.bf16.mxu0 0
        %872 = vmatpush1.bf16.xpose.msra.mxu0 0
        %873 = vmatprep.subr.bf16.mxu0 0
        %874 = vmatpush1.bf16.xpose.msra.mxu0 0
        %875 = vmatprep.subr.bf16.mxu0 0
        %876 = vmatpush1.bf16.xpose.msra.mxu0 0
        %877 = vmatprep.subr.bf16.mxu0 0
        %878 = vmatpush1.bf16.xpose.msra.mxu0 0
        %879 = vmatprep.subr.bf16.mxu0 0
        %880 = vmatpush1.bf16.xpose.msra.mxu0 0
        %881 = vmatprep.subr.bf16.mxu0 0
        %882 = vmatpush1.bf16.xpose.msra.mxu0 %v865
        %883 = vmatprep.subr.bf16.mxu0 0
        %884 = vmatpush2.bf16.xpose.msra.mxu0 0
        %885 = vmatprep.subr.bf16.mxu0 0
        %886 = vmatpush2.bf16.xpose.msra.mxu0 0
        %887 = vmatprep.subr.bf16.mxu0 0
        %888 = vmatpush2.bf16.xpose.msra.mxu0 0
        %889 = vmatprep.subr.bf16.mxu0 0
        %890 = vmatpush2.bf16.xpose.msra.mxu0 0
        %891 = vmatprep.subr.bf16.mxu0 0
        %892 = vmatpush2.bf16.xpose.msra.mxu0 0
        %893 = vmatprep.subr.bf16.mxu0 0
        %894 = vmatpush2.bf16.xpose.msra.mxu0 0
        %895 = vmatprep.subr.bf16.mxu0 0
        %896 = vmatpush2.bf16.xpose.msra.mxu0 0
        %897 = vmatprep.subr.bf16.mxu0 0
        %898 = vmatpush2.bf16.xpose.msra.mxu0 0
        %899 = vmatprep.mubr.bf16.mxu0 0
        %900 = vmatmul.mubr.bf16.gmra.mxu0 %v862
        %v901 = vpop.f32.mrf.mxu0
        %v902 = vadd.f32 0.0, %v901
        %v903 = vpop.f32.mrf.mxu0
        %v904 = vpop.f32.mrf.mxu0
        %v905 = vpop.f32.mrf.mxu0
        %906 = vdwg.mxu0
        %v907 = vsel %vm384, %v902, -inf
        %908 = vmax.xlane.f32.xlu0 %v907
        %v909 = vpop.xlane.xlu0 %908
        %v910 = vsub.f32 %v902, %v909
        %v911 = vmul.f32 %v910, 1.442695
        %v912 = vpow.pop %v911
        %v913 = vsel %vm384, %v912, 0.0
        %914 = vadd.xlane.f32.xlu0 %v913
        %v915 = vpop.xlane.xlu0 %914
        %v916 = vpack.c.bf16 %v912, %v912
        %917 = vrot.lane.b32.xlu0 %v380, 40
        %v918 = vpop.permute.xlu0 %917
        %v920 = vsel %vm384, %v916, 0
        %v923 = vsel %vm446, %v918, 0
        %925 = vmatprep.subr.bf16.mxu0 0
        %926 = vmatpush1.bf16.msra.mxu0 0
        %927 = vmatprep.subr.bf16.mxu0 0
        %928 = vmatpush1.bf16.msra.mxu0 0
        %929 = vmatprep.subr.bf16.mxu0 0
        %930 = vmatpush1.bf16.msra.mxu0 0
        %931 = vmatprep.subr.bf16.mxu0 0
        %932 = vmatpush1.bf16.msra.mxu0 0
        %933 = vmatprep.subr.bf16.mxu0 0
        %934 = vmatpush1.bf16.msra.mxu0 0
        %935 = vmatprep.subr.bf16.mxu0 0
        %936 = vmatpush1.bf16.msra.mxu0 0
        %937 = vmatprep.subr.bf16.mxu0 0
        %938 = vmatpush1.bf16.msra.mxu0 0
        %939 = vmatprep.subr.bf16.mxu0 0
        %940 = vmatpush1.bf16.msra.mxu0 %v923
        %941 = vmatprep.subr.bf16.mxu0 0
        %942 = vmatpush2.bf16.msra.mxu0 0
        %943 = vmatprep.subr.bf16.mxu0 0
        %944 = vmatpush2.bf16.msra.mxu0 0
        %945 = vmatprep.subr.bf16.mxu0 0
        %946 = vmatpush2.bf16.msra.mxu0 0
        %947 = vmatprep.subr.bf16.mxu0 0
        %948 = vmatpush2.bf16.msra.mxu0 0
        %949 = vmatprep.subr.bf16.mxu0 0
        %950 = vmatpush2.bf16.msra.mxu0 0
        %951 = vmatprep.subr.bf16.mxu0 0
        %952 = vmatpush2.bf16.msra.mxu0 0
        %953 = vmatprep.subr.bf16.mxu0 0
        %954 = vmatpush2.bf16.msra.mxu0 0
        %955 = vmatprep.subr.bf16.mxu0 0
        %956 = vmatpush2.bf16.msra.mxu0 0
        %957 = vmatprep.mubr.bf16.mxu0 0
        %958 = vmatmul.mubr.bf16.gmra.mxu0 %v920
        %v959 = vpop.f32.mrf.mxu0
        %v960 = vadd.f32 0.0, %v959
        %v961 = vpop.f32.mrf.mxu0
        %v962 = vpop.f32.mrf.mxu0
        %v963 = vpop.f32.mrf.mxu0
        %964 = vdwg.mxu0
        %v965 = vrcp.pop %v915
        %v966 = vmul.f32 %v960, %v965
        %v967 = vpack.c.bf16 %v966, %v966
        %v968 = vld [vmem:[#allocation7 + $0xc] sm:$0xf]
        %v970 = vsel %vm384, %v967, 0
        %v973 = vsel %vm446, %v968, 0
        %975 = vmatprep.subr.bf16.mxu0 0
        %976 = vmatpush1.bf16.msra.mxu0 0
        %977 = vmatprep.subr.bf16.mxu0 0
        %978 = vmatpush1.bf16.msra.mxu0 0
        %979 = vmatprep.subr.bf16.mxu0 0
        %980 = vmatpush1.bf16.msra.mxu0 0
        %981 = vmatprep.subr.bf16.mxu0 0
        %982 = vmatpush1.bf16.msra.mxu0 0
        %983 = vmatprep.subr.bf16.mxu0 0
        %984 = vmatpush1.bf16.msra.mxu0 0
        %985 = vmatprep.subr.bf16.mxu0 0
        %986 = vmatpush1.bf16.msra.mxu0 0
        %987 = vmatprep.subr.bf16.mxu0 0
        %988 = vmatpush1.bf16.msra.mxu0 0
        %989 = vmatprep.subr.bf16.mxu0 0
        %990 = vmatpush1.bf16.msra.mxu0 %v973
        %991 = vmatprep.subr.bf16.mxu0 0
        %992 = vmatpush2.bf16.msra.mxu0 0
        %993 = vmatprep.subr.bf16.mxu0 0
        %994 = vmatpush2.bf16.msra.mxu0 0
        %995 = vmatprep.subr.bf16.mxu0 0
        %996 = vmatpush2.bf16.msra.mxu0 0
        %997 = vmatprep.subr.bf16.mxu0 0
        %998 = vmatpush2.bf16.msra.mxu0 0
        %999 = vmatprep.subr.bf16.mxu0 0
        %1000 = vmatpush2.bf16.msra.mxu0 0
        %1001 = vmatprep.subr.bf16.mxu0 0
        %1002 = vmatpush2.bf16.msra.mxu0 0
        %1003 = vmatprep.subr.bf16.mxu0 0
        %1004 = vmatpush2.bf16.msra.mxu0 0
        %1005 = vmatprep.subr.bf16.mxu0 0
        %1006 = vmatpush2.bf16.msra.mxu0 0
        %1007 = vmatprep.mubr.bf16.mxu0 0
        %1008 = vmatmul.mubr.bf16.gmra.mxu0 %v970
        %v1009 = vpop.f32.mrf.mxu0
        %v1010 = vadd.f32 0.0, %v1009
        %v1011 = vpop.f32.mrf.mxu0
        %v1012 = vpop.f32.mrf.mxu0
        %v1013 = vpop.f32.mrf.mxu0
        %1014 = vdwg.mxu0
        %v1015 = vadd.f32 %v856, %v1010
        %p1016 = scmp.eq.s32.totalorder %s28, 0
        // Predicated region
        $region53: #{tpu_custom_call.1} parent=39 // pred_check
          %p1017 = pneg %p1016
        $region54: #{tpu_custom_call.1} parent=39 // pred_check_branch
          %1019 = sbr.rel (%p1017) target = $region56
        $region55: #{tpu_custom_call.1} parent=39 // pred_region
          %v1020 = vld [vmem:[%s4] sm:$0x1]
          %v1022 = vlaneseq
          %v1023 = vshrl.u32 %v1022, 7
          %v1024 = vsub.s32 0, %v1023
          %v1025 = vrot.slane %v1020, %v1024
          %1027 = vst.msk [vmem:[%s307] sm:$0xff] %vm336, %v1025
        $region56: #{tpu_custom_call.1} parent=39 // pred_fallthru
          _
        %v1028 = vld [vmem:[%s307] sm:$0xff]
        %v1029 = vadd.f32 %v1028, %v1015
        %1030 = vst.msk [vmem:[%s307] sm:$0xff] %vm336, %v1029
        %s1031 = sand.u32 %s168, 1
        %s1032 = scalar_lea.sflag [#allocation4], %s1031
        %s1033 = sand.u32 %s168, 1
        %s1034 = smul.addr %s1033, 8
        %s1035 = scalar_lea.vmem [#allocation8], %s1034
        // Predicated region
        $region57: #{tpu_custom_call.1} parent=39 // pred_check
          %p1036 = pneg %p178
        $region58: #{tpu_custom_call.1} parent=39 // pred_check_branch
          %1038 = sbr.rel (%p1036) target = $region60
        $region59: #{tpu_custom_call.1} parent=39 // pred_region
          %s1040 = ssub.s32 128, 128
          %1041 = vsyncadd %s1032, %s1040
          %s1042 = smul.addr %s27, 128
          %s1043 = scalar_lea.hbm %s5, %s1042
          %s1045 = sshll.u32 %s1035, 4
          %s1046 = int_to_ptr.vmem [resolvable:$true] %s1045
          %1048 = dma.vmem_to_hbm [thread:$0]  %s1046, 128, %s1043, %s1032
        $region60: #{tpu_custom_call.1} parent=39 // pred_fallthru
          _
      $region40: #{tpu_custom_call.1} parent=5 // pred_fallthru
        _
      %p1049 = scmp.le.s32.totalorder 2, %s18
      // Predicated region
      $region61: #{tpu_custom_call.1} parent=5 // pred_check
        %p1050 = pneg %p1049
      $region62: #{tpu_custom_call.1} parent=5 // pred_check_branch
        %1052 = sbr.rel (%p1050) target = $region64
      $region63: #{tpu_custom_call.1} parent=5 // pred_region
        %s1053 = ssub.s32 %s18, 2
        // Predicated region
        $region65: #{tpu_custom_call.1} parent=63 // pred_check
          %p1054 = pneg %p184
        $region66: #{tpu_custom_call.1} parent=63 // pred_check_branch
          %1056 = sbr.rel (%p1054) target = $region68
        $region67: #{tpu_custom_call.1} parent=63 // pred_region
          %s1057 = sand.u32 %s169, 1
          %s1058 = scalar_lea.sflag [#allocation4], %s1057
          %s1059 = sand.u32 %s169, 1
          %s1060 = smul.addr %s1059, 8
          %s1061 = scalar_lea.vmem [#allocation8], %s1060
          %1062 = dma.done %s1058, 128
        $region68: #{tpu_custom_call.1} parent=63 // pred_fallthru
          _
      $region64: #{tpu_custom_call.1} parent=5 // pred_fallthru
        _
    $region6: #{tpu_custom_call.1} parent=1 // loop_footer
      %s22 = sadd.s32 1, %s18
    $region7: #{tpu_custom_call.1} parent=1 // loop_footer_branch
      %17 = sbr.rel target = $region3
    $region8: #{tpu_custom_call.1} parent=1 // loop_exit
      _
    %1063 = vsyncpa [#allocation3], 1
    %s1064 = scalar_lea.sflag [#allocation3], 1
    %1065 = vsyncpa %s1064, 1
    %1066 = vsyncpa [#allocation6], 1
    %1067 = vsyncpa [#allocation4], 1
    %s1068 = scalar_lea.sflag [#allocation4], 1
    %1069 = vsyncpa %s1068, 1

</llo_original>
